<compile_context>
chip_gen: v5e
topology: v5e:2x2
jax: 0.10.0
libtpu: 0.0.40
codegen_flags: <defaults>
</compile_context>

<pallas_src>
import functools

import jax
import jax.numpy as jnp
from jax import lax
from jax.experimental import pallas as pl
from jax.experimental.pallas import tpu as pltpu


def _focal_kernel(logit_ref, target_ref, out_ref, *, gamma, smooth, num_class,
                  alpha_vals, hw, tile_hw, mask_tail, reduce_partials):
    """Focal loss for one (image, pixel-tile) block.

    logit_ref : (1, C, tile_hw)  class probabilities (any float dtype)
    target_ref: (1, 1, tile_hw)  int32 class index per pixel
    out_ref   : (1, 128)         lane-dense per-tile partial sum  (reduce_partials)
                (1, 1, tile_hw)  per-pixel loss                   (otherwise)
    """
    x = logit_ref[0].astype(jnp.float32)       # (C, tile_hw): classes on sublanes
    tgt = target_ref[0]                        # (1, tile_hw): pixels on lanes

    lo = smooth / (num_class - 1)
    hi = 1.0 - smooth
    cls = lax.broadcasted_iota(jnp.int32, x.shape, 0)        # class id per sublane row
    key = jnp.where(cls == tgt, hi, lo)                      # clamped one-hot
    pt = jnp.sum(key * x, axis=0, keepdims=True) + smooth    # (1, tile_hw)

    if mask_tail:
        # Ragged last tile: out-of-range pixels are forced to pt == 1.0 so that
        # (1-pt)^gamma == 0 and log(pt) == 0 -> exactly zero contribution
        # (also neutralizes any garbage read past the array bound).
        pix = lax.broadcasted_iota(jnp.int32, pt.shape, 1) + pl.program_id(1) * tile_hw
        pt = jnp.where(pix < hw, pt, 1.0)

    logpt = jnp.log(pt)
    one_minus = 1.0 - pt
    if isinstance(gamma, int):
        focal = one_minus ** gamma                  # exact even if 1-pt rounds < 0
    else:
        focal = jnp.power(jnp.maximum(one_minus, 0.0), gamma)
    loss = -(focal * logpt)                         # (1, tile_hw)

    if alpha_vals is not None:
        # Per-class alpha weights are compile-time constants -> cheap select chain.
        alpha_pix = jnp.full(tgt.shape, alpha_vals[0], jnp.float32)
        for c in range(1, num_class):
            alpha_pix = jnp.where(tgt == c, alpha_vals[c], alpha_pix)
        loss = loss * alpha_pix

    if reduce_partials:
        total = jnp.sum(loss, axis=1, keepdims=True)             # (1, 1)
        lane = lax.broadcasted_iota(jnp.int32, (1, 128), 1)
        out_ref[...] = jnp.where(lane == 0, total, 0.0)          # lane-dense store
    else:
        out_ref[0] = loss                                        # lane-dense store


def focal_loss(logit, target, *, alpha=None, gamma=2, balance_index=0,
               smooth=1e-5, size_average=True, tile_hw=None):
    """logit: (N, C, H, W) probabilities (apply_nonlin=None). target: (N,1,H,W) or (N,H,W) ints."""
    N, C = int(logit.shape[0]), int(logit.shape[1])
    HW = 1
    for d in logit.shape[2:]:
        HW *= int(d)

    # Free reshapes only (no transpose, no concatenate): pixels stay contiguous
    # on the last (lane) axis, classes sit on the sublane axis.
    x = logit.reshape(N, C, HW)
    if not jnp.issubdtype(x.dtype, jnp.floating) or x.dtype == jnp.float64:
        x = x.astype(jnp.float32)
    t = target.reshape(N, 1, HW).astype(jnp.int32)

    # alpha handling (same cases as the PyTorch __init__/forward), baked in as
    # compile-time constants so alpha=None costs nothing in the kernel.
    if alpha is None:
        alpha_vals = None
    elif isinstance(alpha, float):
        alpha_vals = tuple(float(alpha) if c == balance_index else 1.0 - float(alpha)
                           for c in range(C))
    else:
        a = [float(v) for v in alpha]
        assert len(a) == C
        s = sum(a)
        alpha_vals = tuple(v / s for v in a)

    # Tile-size selection: big tiles (amortize per-step overhead), auto-shrunk
    # so 2x double-buffered input blocks stay well under the default scoped
    # VMEM limit on every generation (v7x has only 64 MiB physical VMEM).
    bytes_per_pix = C * x.dtype.itemsize + 4          # logit row + int32 target
    vmem_budget = 12 * 1024 * 1024                    # per-buffer budget
    max_tile = max(128, ((vmem_budget // bytes_per_pix) // 128) * 128)
    if tile_hw is None:
        tile_hw = 8192
    tile_hw = min(int(tile_hw), max_tile)
    if tile_hw >= HW:
        tile_hw = HW                                  # full-dim block: always legal
    else:
        tile_hw = max(128, (tile_hw // 128) * 128)    # lane-aligned block
        if tile_hw >= HW:
            tile_hw = HW

    num_t = pl.cdiv(HW, tile_hw)
    mask_tail = (HW % tile_hw) != 0

    g = float(gamma)
    gamma_arg = int(g) if g.is_integer() else g

    kernel = functools.partial(
        _focal_kernel, gamma=gamma_arg, smooth=float(smooth), num_class=C,
        alpha_vals=alpha_vals, hw=HW, tile_hw=tile_hw, mask_tail=mask_tail,
        reduce_partials=bool(size_average))

    in_specs = [
        pl.BlockSpec((1, C, tile_hw), lambda n, ti: (n, 0, ti)),
        pl.BlockSpec((1, 1, tile_hw), lambda n, ti: (n, 0, ti)),
    ]
    if size_average:
        # Tiny lane-dense per-tile partial sums; the grid stays fully "parallel"
        # (no grid-carried accumulator) so both v7x TensorCores get work.
        out_shape = jax.ShapeDtypeStruct((1, N * num_t * 128), jnp.float32)
        out_specs = pl.BlockSpec((1, 128), lambda n, ti: (0, n * num_t + ti))
    else:
        out_shape = jax.ShapeDtypeStruct((N, 1, HW), jnp.float32)
        out_specs = pl.BlockSpec((1, 1, tile_hw), lambda n, ti: (n, 0, ti))

    out = pl.pallas_call(
        kernel,
        out_shape=out_shape,
        grid_spec=pltpu.PrefetchScalarGridSpec(
            num_scalar_prefetch=0,
            grid=(N, num_t),
            in_specs=in_specs,
            out_specs=out_specs,
        ),
        compiler_params=pltpu.CompilerParams(
            dimension_semantics=("parallel", "parallel")),
    )(x, t)

    if size_average:
        return jnp.sum(out) / float(N * HW)
    return out.reshape(N * HW)


def _focal_loss_ref(logit, target, *, alpha=None, gamma=2, balance_index=0,
                    smooth=1e-5, size_average=True):
    """Pure-JAX reference mirroring the PyTorch forward."""
    N, C = logit.shape[0], logit.shape[1]
    x = logit.reshape(N, C, -1).transpose(0, 2, 1).reshape(-1, C).astype(jnp.float32)
    t = target.reshape(-1).astype(jnp.int32)
    if alpha is None:
        av = jnp.ones((C,), jnp.float32)
    elif isinstance(alpha, float):
        av = jnp.full((C,), 1.0 - alpha, jnp.float32).at[balance_index].set(alpha)
    else:
        a = jnp.asarray(alpha, jnp.float32).reshape(-1)
        av = a / a.sum()
    one_hot = jax.nn.one_hot(t, C, dtype=jnp.float32)
    one_hot = jnp.clip(one_hot, smooth / (C - 1), 1.0 - smooth)
    pt = jnp.sum(one_hot * x, axis=1) + smooth
    logpt = jnp.log(pt)
    loss = -1.0 * av[t] * jnp.power(1.0 - pt, gamma) * logpt
    return loss.mean() if size_average else loss


if __name__ == "__main__":
    key = jax.random.PRNGKey(0)
    k1, k2 = jax.random.split(key)

    N, C, H, W = 2, 4, 16, 16
    # Module applies no nonlinearity (apply_nonlin=None) and takes log(pt),
    # so inputs must be valid probabilities -> softmax over the class axis.
    raw = jax.random.normal(k1, (N, C, H, W), dtype=jnp.float32)
    logit = jax.nn.softmax(raw, axis=1)
    target = jax.random.randint(k2, (N, 1, H, W), 0, C, dtype=jnp.int32)

    # Default path: alpha=None, gamma=2, size_average=True (mean).
    out = jax.block_until_ready(focal_loss(logit, target))
    ref = jax.block_until_ready(_focal_loss_ref(logit, target))
    assert jnp.allclose(out, ref, rtol=1e-5, atol=1e-6), (out, ref)

    # Per-element path (size_average=False).
    out_pe = jax.block_until_ready(focal_loss(logit, target, size_average=False))
    ref_pe = jax.block_until_ready(_focal_loss_ref(logit, target, size_average=False))
    assert out_pe.shape == ref_pe.shape
    assert jnp.allclose(out_pe, ref_pe, rtol=1e-5, atol=1e-6)

    # Per-class alpha weights (list case).
    alpha = [1.0, 2.0, 3.0, 4.0]
    out_a = jax.block_until_ready(focal_loss(logit, target, alpha=alpha))
    ref_a = jax.block_until_ready(_focal_loss_ref(logit, target, alpha=alpha))
    assert jnp.allclose(out_a, ref_a, rtol=1e-5, atol=1e-6), (out_a, ref_a)

    print("KERNEL_OK")
</pallas_src>

<mosaic_0001>
module attributes {stable_mosaic.version = 11 : i64} {
  func.func @_focal_kernel(%arg0: i32, %arg1: i32, %arg2: memref<1x4x256xf32, #tpu.memory_space<vmem>>, %arg3: memref<1x1x256xi32, #tpu.memory_space<vmem>>, %arg4: memref<1x128xf32, #tpu.memory_space<vmem>>) attributes {dimension_semantics = [#tpu.dimension_semantics<parallel>, #tpu.dimension_semantics<parallel>], iteration_bounds = array<i64: 2, 1>, scalar_prefetch = 0 : i64, scratch_operands = 0 : i64, tpu.core_type = #tpu.core_type<tc>, window_params = [{transform_indices = @transform_0, window_bounds = array<i64: 1, 4, 256>}, {transform_indices = @transform_1, window_bounds = array<i64: 1, 1, 256>}, {transform_indices = @transform_2, window_bounds = array<i64: 1, 128>}]} {
    %c0 = arith.constant 0 : index
    %c0_0 = arith.constant 0 : index
    %c0_1 = arith.constant 0 : index
    %0 = vector.load %arg2[%c0, %c0_0, %c0_1] : memref<1x4x256xf32, #tpu.memory_space<vmem>>, vector<1x4x256xf32>
    %1 = vector.shape_cast %0 : vector<1x4x256xf32> to vector<4x256xf32>
    %c0_2 = arith.constant 0 : index
    %c0_3 = arith.constant 0 : index
    %c0_4 = arith.constant 0 : index
    %2 = vector.load %arg3[%c0_2, %c0_3, %c0_4] : memref<1x1x256xi32, #tpu.memory_space<vmem>>, vector<1x1x256xi32>
    %3 = vector.shape_cast %2 : vector<1x1x256xi32> to vector<1x256xi32>
    %4 = tpu.iota {dimensions = array<i32: 0>} : vector<4x256xi32>
    %5 = vector.broadcast %3 : vector<1x256xi32> to vector<4x256xi32>
    %6 = arith.cmpi eq, %4, %5 : vector<4x256xi32>
    %cst = arith.constant 0.999989986 : f32
    %cst_5 = arith.constant 3.33333332E-6 : f32
    %7 = vector.broadcast %cst : f32 to vector<4x256xf32>
    %8 = vector.broadcast %cst_5 : f32 to vector<4x256xf32>
    %9 = arith.select %6, %7, %8 : vector<4x256xi1>, vector<4x256xf32>
    %10 = arith.mulf %9, %1 : vector<4x256xf32>
    %cst_6 = arith.constant dense<0.000000e+00> : vector<256xf32>
    %11 = vector.multi_reduction <add>, %10, %cst_6 [0] : vector<4x256xf32> to vector<256xf32>
    %12 = vector.shape_cast %11 : vector<256xf32> to vector<1x256xf32>
    %cst_7 = arith.constant 9.99999974E-6 : f32
    %13 = vector.broadcast %cst_7 : f32 to vector<1x256xf32>
    %14 = arith.addf %12, %13 : vector<1x256xf32>
    %15 = math.log %14 : vector<1x256xf32>
    %cst_8 = arith.constant 1.000000e+00 : f32
    %16 = vector.broadcast %cst_8 : f32 to vector<1x256xf32>
    %17 = arith.subf %16, %14 : vector<1x256xf32>
    %18 = arith.mulf %17, %17 : vector<1x256xf32>
    %19 = arith.mulf %18, %15 : vector<1x256xf32>
    %cst_9 = arith.constant 0.000000e+00 : f32
    %20 = vector.broadcast %cst_9 : f32 to vector<1x256xf32>
    %21 = arith.subf %20, %19 : vector<1x256xf32>
    %cst_10 = arith.constant dense<0.000000e+00> : vector<1xf32>
    %22 = vector.multi_reduction <add>, %21, %cst_10 [1] : vector<1x256xf32> to vector<1xf32>
    %23 = vector.shape_cast %22 : vector<1xf32> to vector<1x1xf32>
    %24 = tpu.iota {dimensions = array<i32: 1>} : vector<1x128xi32>
    %c0_i32 = arith.constant 0 : i32
    %25 = vector.broadcast %c0_i32 : i32 to vector<1x128xi32>
    %26 = arith.cmpi eq, %24, %25 : vector<1x128xi32>
    %cst_11 = arith.constant 0.000000e+00 : f32
    %27 = vector.shape_cast %23 : vector<1x1xf32> to vector<1x1xf32>
    %28 = vector.broadcast %27 : vector<1x1xf32> to vector<1x128xf32>
    %29 = vector.broadcast %cst_11 : f32 to vector<1x128xf32>
    %30 = arith.select %26, %28, %29 : vector<1x128xi1>, vector<1x128xf32>
    %c0_12 = arith.constant 0 : index
    %c0_13 = arith.constant 0 : index
    %31 = vector.load %arg4[%c0_12, %c0_13] : memref<1x128xf32, #tpu.memory_space<vmem>>, vector<1x128xf32>
    tpu.vector_store %arg4[%c0_12, %c0_13], %30 {strides = array<i32>} : memref<1x128xf32, #tpu.memory_space<vmem>>, vector<1x128xf32>,
    return
  }
  func.func @transform_0(%arg0: i32, %arg1: i32) -> (i32, i32, i32) {
    %c0_i32 = arith.constant 0 : i32
    %c0_i32_0 = arith.constant 0 : i32
    return %arg0, %c0_i32, %arg1 : i32, i32, i32
  }
  func.func @transform_1(%arg0: i32, %arg1: i32) -> (i32, i32, i32) {
    %c0_i32 = arith.constant 0 : i32
    %c0_i32_0 = arith.constant 0 : i32
    return %arg0, %c0_i32, %arg1 : i32, i32, i32
  }
  func.func @transform_2(%arg0: i32, %arg1: i32) -> (i32, i32) {
    %c1_i32 = arith.constant 1 : i32
    %0 = arith.muli %arg0, %c1_i32 : i32
    %1 = arith.addi %0, %arg1 : i32
    %c0_i32 = arith.constant 0 : i32
    %c0_i32_0 = arith.constant 0 : i32
    return %c0_i32, %1 : i32, i32
  }
}

</mosaic_0001>

<llo_original>
// kernel: tpu_custom_call.1
$region0: #{tpu_custom_call.1}
  #allocation0 [shape = 'u32[]', space=smem, size = 0x4, offset = 0x4, fixed_abs, tag = 'smem constant byte address 0x4 - core index']
  #allocation1 [shape = 'u32[72,128]{1,0:T(1,128)}', space=vmem, size = 0x9000, scoped, tag = 'internal scratch']
  %s0 = inlined_call_operand.hbm [shape: f32[2,4,256], index: 0, kind: input, shape index: {}]
  %s1 = inlined_call_operand.hbm [shape: s32[2,1,256], index: 1, kind: input, shape index: {}]
  %s2 = inlined_call_operand.hbm [shape: f32[1,256], index: 2, kind: output, shape index: {}]
  %s3 = sld [smem:[#allocation0]]
  $region49: #{tpu_custom_call.1} parent=0
    _
  %s5 = ssub.s32 1, %s3
  %s6 = scalar_select 0, %s5, %s3
  $region1: #{tpu_custom_call.1} parent=0
    #allocation2 [shape = 'u8[8192]{0}', space=vmem, size = 0x2000, scoped, tag = 'input window, operand 0']
    #allocation3 [shape = 's32[2]{0}', space=sflag, size = 0x8, scoped, tag = 'scoped memory for tpu_custom_call.1']
    #allocation4 [shape = 's32[2]{0}', space=sflag, size = 0x8, scoped, tag = 'scoped memory for tpu_custom_call.1']
    #allocation5 [shape = 'u8[2048]{0}', space=vmem, size = 0x800, scoped, tag = 'input window, operand 1']
    #allocation6 [shape = 's32[2]{0}', space=sflag, size = 0x8, scoped, tag = 'scoped memory for tpu_custom_call.1']
    #allocation7 [shape = 'u8[1024]{0}', space=vmem, size = 0x400, scoped, tag = 'output window, operand 0']
    %7 = vsyncpa [#allocation3], 0
    %s8 = scalar_lea.sflag [#allocation3], 1
    %9 = vsyncpa %s8, 0
    %10 = vsyncpa [#allocation6], 0
    %s11 = scalar_lea.sflag [#allocation6], 1
    %12 = vsyncpa %s11, 0
    %13 = vsyncpa [#allocation4], 0
    %s14 = scalar_lea.sflag [#allocation4], 1
    %15 = vsyncpa %s14, 0
    loop: start=0, step=1, limit=4
    $region2: #{tpu_custom_call.1} parent=1 // loop_pre_header
      _
    $region3: #{tpu_custom_call.1} parent=1 // loop_header
      %s17 = sphi 0, %s21
      %p18 = scmp.ge.s32.totalorder %s17, 4
      %s24 = sphi 0, %s36
      %s25 = sphi 0, %s32
      %s26 = sphi 0, %s24
      %s27 = sphi 0, %s25
      %s28 = sphi 0, %s26
      %s29 = sphi 0, %s27
      %s41 = sphi 0, %s43
      %s44 = sphi 0, %s41
      %s45 = sphi 0, %s44
      %s61 = sphi 0, %s45
      %s69 = sphi 0, %s71
      %s72 = sphi 0, %s69
      %s73 = sphi 0, %s72
      %s89 = sphi 0, %s73
      %s97 = sphi 0, %s99
      %s100 = sphi 0, %s97
      %s101 = sphi 0, %s100
      %s117 = sphi 0, %s101
    $region4: #{tpu_custom_call.1} parent=1 // loop_header_branch
      %20 = sbr.rel (%p18) target = $region8
    $region5: #{tpu_custom_call.1} parent=1 // loop_body
      %s22 = ssub.s32 %s17, 1
      %s23 = ssub.s32 %s17, 2
      %s30 = sadd.s32 1, %s25
      %p31 = scmp.ge.s32.totalorder %s30, 1
      %s32 = scalar_select %p31, 0, %s30
      %s33 = sadd.s32 1, %s24
      %s34 = scalar_select %p31, %s33, %s24
      %p35 = scmp.ge.s32.totalorder %s34, 2
      %s36 = scalar_select %p35, 0, %s34
      %s37 = ssub.s32 %s24, %s36
      %s38 = ssub.s32 %s25, %s32
      %s39 = sor.u32 %s37, %s38
      %p40 = scmp.eq.s32.totalorder %s39, 0
      %s42 = sadd.s32 %s41, 1
      %s43 = scalar_select %p40, %s41, %s42
      %p46 = pneg %p40
      %p47 = scmp.eq.s32.totalorder %s17, 1
      %p48 = por %p46, %p47
      %p49 = scmp.ne.s32.totalorder %s41, %s44
      %p50 = scmp.eq.s32.totalorder %s17, 0
      %p51 = por %p49, %p50
      %p52 = scmp.ne.s32.totalorder %s41, %s44
      %p53 = scmp.eq.s32.totalorder %s22, 1
      %p54 = por %p52, %p53
      %p55 = scmp.ne.s32.totalorder %s44, %s45
      %p56 = scmp.eq.s32.totalorder %s22, 0
      %p57 = por %p55, %p56
      %p58 = scmp.ne.s32.totalorder %s44, %s45
      %p59 = scmp.eq.s32.totalorder %s23, 1
      %p60 = por %p58, %p59
      %p62 = scmp.ne.s32.totalorder %s45, %s61
      %p63 = scmp.eq.s32.totalorder %s23, 0
      %p64 = por %p62, %p63
      %s65 = ssub.s32 %s24, %s36
      %s66 = ssub.s32 %s25, %s32
      %s67 = sor.u32 %s65, %s66
      %p68 = scmp.eq.s32.totalorder %s67, 0
      %s70 = sadd.s32 %s69, 1
      %s71 = scalar_select %p68, %s69, %s70
      %p74 = pneg %p68
      %p75 = scmp.eq.s32.totalorder %s17, 1
      %p76 = por %p74, %p75
      %p77 = scmp.ne.s32.totalorder %s69, %s72
      %p78 = scmp.eq.s32.totalorder %s17, 0
      %p79 = por %p77, %p78
      %p80 = scmp.ne.s32.totalorder %s69, %s72
      %p81 = scmp.eq.s32.totalorder %s22, 1
      %p82 = por %p80, %p81
      %p83 = scmp.ne.s32.totalorder %s72, %s73
      %p84 = scmp.eq.s32.totalorder %s22, 0
      %p85 = por %p83, %p84
      %p86 = scmp.ne.s32.totalorder %s72, %s73
      %p87 = scmp.eq.s32.totalorder %s23, 1
      %p88 = por %p86, %p87
      %p90 = scmp.ne.s32.totalorder %s73, %s89
      %p91 = scmp.eq.s32.totalorder %s23, 0
      %p92 = por %p90, %p91
      %s93 = sadd.s32 %s24, %s25
      %s94 = sadd.s32 %s36, %s32
      %s95 = ssub.s32 %s93, %s94
      %p96 = scmp.eq.s32.totalorder %s95, 0
      %s98 = sadd.s32 %s97, 1
      %s99 = scalar_select %p96, %s97, %s98
      %p102 = pneg %p96
      %p103 = scmp.eq.s32.totalorder %s17, 1
      %p104 = por %p102, %p103
      %p105 = scmp.ne.s32.totalorder %s97, %s100
      %p106 = scmp.eq.s32.totalorder %s17, 0
      %p107 = por %p105, %p106
      %p108 = scmp.ne.s32.totalorder %s97, %s100
      %p109 = scmp.eq.s32.totalorder %s22, 1
      %p110 = por %p108, %p109
      %p111 = scmp.ne.s32.totalorder %s100, %s101
      %p112 = scmp.eq.s32.totalorder %s22, 0
      %p113 = por %p111, %p112
      %p114 = scmp.ne.s32.totalorder %s100, %s101
      %p115 = scmp.eq.s32.totalorder %s23, 1
      %p116 = por %p114, %p115
      %p118 = scmp.ne.s32.totalorder %s101, %s117
      %p119 = scmp.eq.s32.totalorder %s23, 0
      %p120 = por %p118, %p119
      %p121 = scmp.le.s32.totalorder 1, %s17
      %p122 = scmp.lt.s32.totalorder %s17, 3
      %p123 = pnand %p121, %p122
      %p124 = pneg %p123
      // Predicated region
      $region9: #{tpu_custom_call.1} parent=5 // pred_check
        _
      $region10: #{tpu_custom_call.1} parent=5 // pred_check_branch
        %126 = sbr.rel (%p123) target = $region12
      $region11: #{tpu_custom_call.1} parent=5 // pred_region
        %s127 = ssub.s32 %s17, 1
      $region12: #{tpu_custom_call.1} parent=5 // pred_fallthru
        _
      %p128 = scmp.lt.s32.totalorder %s17, 2
      // Predicated region
      $region13: #{tpu_custom_call.1} parent=5 // pred_check
        %p129 = pneg %p128
      $region14: #{tpu_custom_call.1} parent=5 // pred_check_branch
        %131 = sbr.rel (%p129) target = $region16
      $region15: #{tpu_custom_call.1} parent=5 // pred_region
        // Predicated region
        $region17: #{tpu_custom_call.1} parent=15 // pred_check
          %p132 = pneg %p51
        $region18: #{tpu_custom_call.1} parent=15 // pred_check_branch
          %134 = sbr.rel (%p132) target = $region20
        $region19: #{tpu_custom_call.1} parent=15 // pred_region
          %s135 = sand.u32 %s41, 1
          %s136 = scalar_lea.sflag [#allocation3], %s135
          %s137 = sand.u32 %s41, 1
          %s138 = smul.addr %s137, 8
          %s139 = scalar_lea.vmem [#allocation2], %s138
          %s140 = smul.u32 2, %s25
          %142 = vsyncadd %s136, 0
          %s143 = smul.addr %s24, 2
          %s144 = sadd.s32 %s140, %s143
          %s145 = smul.addr %s144, 4
          %s146 = scalar_lea.hbm %s0, %s145
          %s148 = sshll.u32 %s146, 4
          %s149 = int_to_ptr.hbm [resolvable:$true] %s148
          %s150 = sshll.u32 %s139, 4
          %s151 = int_to_ptr.vmem [resolvable:$true] %s150
          %153 = dma.hbm_to_vmem [thread:$0]  %s149, 128, %s151, %s136
        $region20: #{tpu_custom_call.1} parent=15 // pred_fallthru
          _
        // Predicated region
        $region21: #{tpu_custom_call.1} parent=15 // pred_check
          %p154 = pneg %p79
        $region22: #{tpu_custom_call.1} parent=15 // pred_check_branch
          %156 = sbr.rel (%p154) target = $region24
        $region23: #{tpu_custom_call.1} parent=15 // pred_region
          %s157 = sand.u32 %s69, 1
          %s158 = scalar_lea.sflag [#allocation6], %s157
          %s159 = sand.u32 %s69, 1
          %s160 = smul.addr %s159, 2
          %s161 = scalar_lea.vmem [#allocation5], %s160
          %s162 = smul.u32 2, %s25
          %164 = vsyncadd %s158, 0
          %s165 = smul.addr %s24, 2
          %s166 = sadd.s32 %s162, %s165
          %s167 = scalar_lea.hbm %s1, %s166
          %s169 = sshll.u32 %s167, 4
          %s170 = int_to_ptr.hbm [resolvable:$true] %s169
          %s171 = sshll.u32 %s161, 4
          %s172 = int_to_ptr.vmem [resolvable:$true] %s171
          %174 = dma.hbm_to_vmem [thread:$0]  %s170, 32, %s172, %s158
        $region24: #{tpu_custom_call.1} parent=15 // pred_fallthru
          _
      $region16: #{tpu_custom_call.1} parent=5 // pred_fallthru
        _
      %p175 = scmp.le.s32.totalorder 1, %s17
      %p176 = scmp.lt.s32.totalorder %s17, 3
      %p177 = pnand %p175, %p176
      %p178 = pneg %p177
      // Predicated region
      $region25: #{tpu_custom_call.1} parent=5 // pred_check
        _
      $region26: #{tpu_custom_call.1} parent=5 // pred_check_branch
        %180 = sbr.rel (%p177) target = $region28
      $region27: #{tpu_custom_call.1} parent=5 // pred_region
        %s181 = ssub.s32 %s17, 1
        %s182 = sand.u32 %s44, 1
        %s183 = scalar_lea.sflag [#allocation3], %s182
        %s184 = sand.u32 %s44, 1
        %s185 = smul.addr %s184, 8
        %s186 = scalar_lea.vmem [#allocation2], %s185
        // Predicated region
        $region29: #{tpu_custom_call.1} parent=27 // pred_check
          %p187 = pneg %p57
        $region30: #{tpu_custom_call.1} parent=27 // pred_check_branch
          %189 = sbr.rel (%p187) target = $region32
        $region31: #{tpu_custom_call.1} parent=27 // pred_region
          %191 = dma.done %s183, 128
        $region32: #{tpu_custom_call.1} parent=27 // pred_fallthru
          _
        %s192 = sand.u32 %s72, 1
        %s193 = scalar_lea.sflag [#allocation6], %s192
        %s194 = sand.u32 %s72, 1
        %s195 = smul.addr %s194, 2
        %s196 = scalar_lea.vmem [#allocation5], %s195
        // Predicated region
        $region33: #{tpu_custom_call.1} parent=27 // pred_check
          %p197 = pneg %p85
        $region34: #{tpu_custom_call.1} parent=27 // pred_check_branch
          %199 = sbr.rel (%p197) target = $region36
        $region35: #{tpu_custom_call.1} parent=27 // pred_region
          %201 = dma.done %s193, 32
        $region36: #{tpu_custom_call.1} parent=27 // pred_fallthru
          _
        %s202 = sand.u32 %s44, 1
        %s203 = scalar_lea.sflag [#allocation3], %s202
        %s204 = sand.u32 %s44, 1
        %s205 = smul.addr %s204, 8
        %s206 = scalar_lea.vmem [#allocation2], %s205
        %p207 = pneg %p57
        %p208 = pneg %p54
        %s209 = sand.u32 %s72, 1
        %s210 = scalar_lea.sflag [#allocation6], %s209
        %s211 = sand.u32 %s72, 1
        %s212 = smul.addr %s211, 2
        %s213 = scalar_lea.vmem [#allocation5], %s212
        %p214 = pneg %p85
        %p215 = pneg %p82
        %p216 = pneg %p113
        %p217 = pneg %p110
        %s218 = sand.u32 %s100, 1
        %s219 = scalar_lea.sflag [#allocation4], %s218
        %s220 = sand.u32 %s100, 1
        %s221 = scalar_lea.vmem [#allocation7], %s220
        %s222 = smul.u32 2, %s27
        %s223 = smul.u32 2, %s27
        %s224 = sadd.s32 %s26, %s27
        %v225 = vld [vmem:[%s186] sm:$0xff]
        %v226 = vld [vmem:[%s196] sm:$0x3]
        %v227 = vlaneseq
        %v228 = vshrl.u32 %v227, 7
        %v229 = vperm.slane %v226, 0
        %v230 = vperm.slane %v226, 1
        %vm231 = vcmp.eq.s32.totalorder %v228, %v229
        %vm232 = vcmp.eq.s32.totalorder %v228, %v230
        %v233 = vsel %vm231, 0.99999, 3.3333333e-06
        %v234 = vsel %vm232, 0.99999, 3.3333333e-06
        %236 = vst [vmem:[#allocation1] ss:$2 sm:$0xff] %v225
        %v237 = vld.sshfl [vmem:[#allocation1] sm:$0xff pattern:$0x75316420]
        %v238 = vld.sshfl [vmem:[#allocation1 + $0x8] sm:$0xff pattern:$0x75316420]
        %v241 = vmul.f32 %v233, %v237
        %v242 = vmul.f32 %v234, %v238
        %vm243 = vcmask 1043456
        %v244 = vsel %vm243, %v241, 0.0
        %v245 = vrot.slane %v244, 4
        %v246 = vadd.f32 %v244, %v245
        %v247 = vrot.slane %v246, 2
        %v248 = vadd.f32 %v246, %v247
        %v249 = vrot.slane %v248, 1
        %v250 = vadd.f32 %v248, %v249
        %v251 = vsel %vm243, %v242, 0.0
        %v252 = vrot.slane %v251, 4
        %v253 = vadd.f32 %v251, %v252
        %v254 = vrot.slane %v253, 2
        %v255 = vadd.f32 %v253, %v254
        %v256 = vrot.slane %v255, 1
        %v257 = vadd.f32 %v255, %v256
        %v258 = vadd.f32 %v250, 1e-05
        %v259 = vadd.f32 %v257, 1e-05
        %v260 = vlog2.pop %v258
        %v261 = vmul.f32 %v260, 0.6931472
        %v262 = vlog2.pop %v259
        %v263 = vmul.f32 %v262, 0.6931472
        %v264 = vsub.f32 1.0, %v258
        %v265 = vsub.f32 1.0, %v259
        %v266 = vmul.f32 %v264, %v264
        %v267 = vmul.f32 %v265, %v265
        %v268 = vmul.f32 %v266, %v261
        %v269 = vmul.f32 %v267, %v263
        %v270 = vsub.f32 0.0, %v268
        %v271 = vsub.f32 0.0, %v269
        %v272 = vadd.f32 %v270, %v271
        %273 = vadd.xlane.f32.xlu0 %v272
        %v274 = vpop.xlane.xlu0 %273
        %v275 = vlaneseq
        %v276 = vand.u32 %v275, 127
        %vm277 = vcmp.eq.s32.totalorder %v276, 0
        %v278 = vsel %vm277, %v274, 0.0
        %279 = vst [vmem:[%s221] sm:$0x1] %v278
        %s280 = sand.u32 %s100, 1
        %s281 = scalar_lea.sflag [#allocation4], %s280
        %s282 = sand.u32 %s100, 1
        %s283 = scalar_lea.vmem [#allocation7], %s282
        // Predicated region
        $region37: #{tpu_custom_call.1} parent=27 // pred_check
          %p284 = pneg %p110
        $region38: #{tpu_custom_call.1} parent=27 // pred_check_branch
          %286 = sbr.rel (%p284) target = $region40
        $region39: #{tpu_custom_call.1} parent=27 // pred_region
          %s287 = sadd.s32 %s26, %s27
          %289 = vsyncadd %s281, 0
          %s290 = scalar_lea.hbm %s2, %s287
          %s292 = sshll.u32 %s283, 4
          %s293 = int_to_ptr.vmem [resolvable:$true] %s292
          %s294 = sshll.u32 %s290, 4
          %s295 = int_to_ptr.hbm [resolvable:$true] %s294
          %297 = dma.vmem_to_hbm [thread:$0]  %s293, 16, %s295, %s281
        $region40: #{tpu_custom_call.1} parent=27 // pred_fallthru
          _
      $region28: #{tpu_custom_call.1} parent=5 // pred_fallthru
        _
      %p298 = scmp.le.s32.totalorder 2, %s17
      // Predicated region
      $region41: #{tpu_custom_call.1} parent=5 // pred_check
        %p299 = pneg %p298
      $region42: #{tpu_custom_call.1} parent=5 // pred_check_branch
        %301 = sbr.rel (%p299) target = $region44
      $region43: #{tpu_custom_call.1} parent=5 // pred_region
        %s302 = ssub.s32 %s17, 2
        // Predicated region
        $region45: #{tpu_custom_call.1} parent=43 // pred_check
          %p303 = pneg %p116
        $region46: #{tpu_custom_call.1} parent=43 // pred_check_branch
          %305 = sbr.rel (%p303) target = $region48
        $region47: #{tpu_custom_call.1} parent=43 // pred_region
          %s306 = sand.u32 %s101, 1
          %s307 = scalar_lea.sflag [#allocation4], %s306
          %s308 = sand.u32 %s101, 1
          %s309 = scalar_lea.vmem [#allocation7], %s308
          %311 = dma.done %s307, 16
        $region48: #{tpu_custom_call.1} parent=43 // pred_fallthru
          _
      $region44: #{tpu_custom_call.1} parent=5 // pred_fallthru
        _
    $region6: #{tpu_custom_call.1} parent=1 // loop_footer
      %s21 = sadd.s32 1, %s17
    $region7: #{tpu_custom_call.1} parent=1 // loop_footer_branch
      %16 = sbr.rel target = $region3
    $region8: #{tpu_custom_call.1} parent=1 // loop_exit
      _
    %312 = vsyncpa [#allocation3], 1
    %s313 = scalar_lea.sflag [#allocation3], 1
    %314 = vsyncpa %s313, 1
    %315 = vsyncpa [#allocation6], 1
    %s316 = scalar_lea.sflag [#allocation6], 1
    %317 = vsyncpa %s316, 1
    %318 = vsyncpa [#allocation4], 1
    %s319 = scalar_lea.sflag [#allocation4], 1
    %320 = vsyncpa %s319, 1

</llo_original>
